<compile_context>
chip_gen: v5e
topology: v5e:2x2
jax: 0.10.0
libtpu: 0.0.40
codegen_flags: <defaults>
</compile_context>

<pallas_src>
import functools

import numpy as np
import jax
import jax.numpy as jnp
from jax.experimental import pallas as pl
from jax.experimental.pallas import tpu as pltpu


def _round_up(n, m):
    return (n + m - 1) // m * m


# ------------------------------ fused kernel ---------------------------------
def _decode_kernel(x_ref, w1_ref, b1_ref, w2_ref, b2_ref,
                   cm1_ref, cb1_ref, w2c_ref, cb2_ref, o_ref):
    f32, bf16 = jnp.float32, jnp.bfloat16
    blk = x_ref.shape[0]                    # batch elements handled this grid step
    rc = cm1_ref.shape[0]                   # W0*C0  (lane width of one input-image row)
    h0 = w2_ref.shape[1] // rc              # H0     (input image height)
    x2w = cb1_ref.shape[1]                  # W1*C1  (conv1 output row width)

    # ---- MLP: Linear(10->128)+ReLU, Linear(128->F)+ReLU  (batched, M = blk) ----
    h = jnp.dot(x_ref[...].astype(bf16), w1_ref[...], preferred_element_type=f32)
    h = jnp.maximum(h + b1_ref[...], 0.0)                          # (blk, 128)
    f = jnp.dot(h.astype(bf16), w2_ref[...], preferred_element_type=f32)
    f = jnp.maximum(f + b2_ref[...], 0.0)                          # (blk, H0*W0*C0) in (h, w, c) order

    # ---- restack image rows onto sublanes, row-major over (image_row, element) --
    #      row j*blk + e  <-  element e, image row j   (aligned concat, blk % 8 == 0)
    f_rows = jnp.concatenate([f[:, j * rc:(j + 1) * rc] for j in range(h0)],
                             axis=0)                               # (H0*blk, rc)

    # ---- ConvTranspose2d #1 (k3 s2 p1 op1), polyphase, ONE matmul (kh along N) --
    g = jnp.dot(f_rows.astype(bf16), cm1_ref[...], preferred_element_type=f32)  # (H0*blk, 3*x2w)
    g1 = g[:, :x2w]                  # kh = 1 taps
    g0 = g[:, x2w:2 * x2w]           # kh = 0 taps
    g2 = g[:, 2 * x2w:]              # kh = 2 taps
    zrow = jnp.zeros((blk, x2w), f32)
    # row (j, e) <- row (j+1, e); zero for the last image row (aligned shift by blk rows)
    g0s = jnp.concatenate([g0[blk:, :], zrow], axis=0)
    x2e = jnp.maximum(g1 + cb1_ref[...], 0.0)                      # conv1 rows a = 2j
    x2o = jnp.maximum(g2 + g0s + cb1_ref[...], 0.0)                # conv1 rows a = 2j+1
    x2es = jnp.concatenate([x2e[blk:, :], zrow], axis=0)           # x2e shifted one image row up

    # ---- ConvTranspose2d #2, polyphase, ONE matmul (operands K-concatenated) ----
    u = jnp.concatenate([x2e.astype(bf16), x2o.astype(bf16), x2es.astype(bf16)],
                        axis=1)                                    # (H0*blk, 3*x2w)
    y = jnp.dot(u, w2c_ref[...], preferred_element_type=f32) + cb2_ref[...]  # (H0*blk, 4*W2)
    o_ref[...] = jax.nn.sigmoid(y)     # lanes = [phase0 | phase1 | phase2 | phase3], phase = out_row % 4


# --------------------- one-time host-side weight prep ------------------------
def _col_mix(w_pt, w_in):
    """M[kh, iw*Cin+ci, b*Cout+co] = W[ci, co, kh, b-2*iw+1] (0 if the tap is out of range)."""
    w_np = np.asarray(w_pt, np.float32)          # (Cin, Cout, 3, 3) torch ConvTranspose2d layout
    c_in, c_out = w_np.shape[0], w_np.shape[1]
    w_out = 2 * w_in
    m = np.zeros((3, w_in * c_in, w_out * c_out), np.float32)
    for kh in range(3):
        for iw in range(w_in):
            for b in range(w_out):
                kw = b - 2 * iw + 1
                if 0 <= kw < 3:
                    m[kh, iw * c_in:(iw + 1) * c_in, b * c_out:(b + 1) * c_out] = w_np[:, :, kh, kw]
    return m


def prepare_params(params, in_pic_size):
    """Fold every layout transform into the weights so the kernel is pure matmul+VPU."""
    C0, H0, W0 = in_pic_size
    W1, W2 = 2 * W0, 4 * W0

    # MLP: zero-pad fc1 to K=128; permute fc2 columns to (h, w, c) lane order.
    w1_raw = np.asarray(params["w1"], np.float32)
    w1p = np.zeros((128, w1_raw.shape[1]), np.float32)
    w1p[:w1_raw.shape[0], :] = w1_raw
    b1 = np.asarray(params["b1"], np.float32).reshape(1, -1)
    perm = np.arange(C0 * H0 * W0).reshape(C0, H0, W0).transpose(1, 2, 0).reshape(-1)
    w2p = np.asarray(params["w2"], np.float32)[:, perm]
    b2p = np.asarray(params["b2"], np.float32).reshape(-1)[perm][None, :]

    # Conv1: kh taps folded along N in [kh=1 | kh=0 | kh=2] order.
    cm1 = _col_mix(params["cw1"], W0)                                    # (3, W0*C0, W1*C1)
    cm1cat = np.concatenate([cm1[1], cm1[0], cm1[2]], axis=1)            # (W0*C0, 3*W1*C1)
    cb1 = np.tile(np.asarray(params["cb1"], np.float32).reshape(-1), W1)[None, :]   # (1, W1*C1)

    # Conv2: K-concat weight for operand [x2_even | x2_odd | x2_even_shifted],
    # N packed as four output-row phases (out row = 4j + phase).
    cm2 = _col_mix(params["cw2"], W1)                                    # (3, W1*C1, W2*C2)
    z = np.zeros_like(cm2[0])
    w_e = np.concatenate([cm2[1], cm2[2], z, z], axis=1)                 # (W1*C1, 4*W2*C2)
    w_o = np.concatenate([z, cm2[0], cm2[1], cm2[2]], axis=1)
    w_s = np.concatenate([z, z, z, cm2[0]], axis=1)
    w2cat = np.concatenate([w_e, w_o, w_s], axis=0)                      # (3*W1*C1, 4*W2*C2)
    cb2 = np.tile(np.asarray(params["cb2"], np.float32).reshape(-1), 4 * W2)[None, :]  # (1, 4*W2*C2)

    return {
        "w1p": jnp.asarray(w1p, jnp.bfloat16),
        "b1": jnp.asarray(b1, jnp.float32),
        "w2p": jnp.asarray(w2p, jnp.bfloat16),
        "b2p": jnp.asarray(b2p, jnp.float32),
        "cm1cat": jnp.asarray(cm1cat, jnp.bfloat16),
        "cb1": jnp.asarray(cb1, jnp.float32),
        "w2cat": jnp.asarray(w2cat, jnp.bfloat16),
        "cb2": jnp.asarray(cb2, jnp.float32),
    }


# ------------------------------- forward -------------------------------------
@functools.partial(jax.jit, static_argnames=("in_pic_size", "block_b"))
def decode_from_num(x, prep, *, in_pic_size, block_b=32):
    C0, H0, W0 = in_pic_size
    H2, W2 = 4 * H0, 4 * W0
    outw = 4 * W2                                    # phase-packed output lane width
    B, L = x.shape

    blk = min(block_b, _round_up(B, 8))              # batch elements per grid step (multiple of 8)
    b_pad = _round_up(B, blk)
    nsteps = b_pad // blk

    # lane-dense, zero-padded input slab (B_pad, 128)
    xp = jnp.zeros((b_pad, 128), jnp.float32).at[:B, :L].set(x.astype(jnp.float32))

    def cspec(arr):  # constant operand: same block every step -> fetched once
        return pl.BlockSpec(arr.shape, lambda i: (0, 0))

    weight_keys = ("w1p", "b1", "w2p", "b2p", "cm1cat", "cb1", "w2cat", "cb2")
    out = pl.pallas_call(
        _decode_kernel,
        out_shape=jax.ShapeDtypeStruct((b_pad * H0, outw), jnp.float32),
        grid=(nsteps,),
        in_specs=[pl.BlockSpec((blk, 128), lambda i: (i, 0))]
                 + [cspec(prep[k]) for k in weight_keys],
        out_specs=pl.BlockSpec((blk * H0, outw), lambda i: (i, 0)),
        compiler_params=pltpu.CompilerParams(dimension_semantics=("parallel",)),
    )(xp, *[prep[k] for k in weight_keys])

    # Unpack: rows are (step, image_row j, element) ; lanes are (phase, w); out row = 4j + phase.
    out = out.reshape(nsteps, H0, blk, 4, W2)        # (i, j, e_local, p, w)
    out = out.transpose(0, 2, 1, 3, 4)               # (i, e_local, j, p, w)
    out = out.reshape(b_pad, H2, W2)[:B]             # (B, H2, W2)
    return out[:, None, :, :]                        # NCHW (B, 1, H2, W2); C2 == 1


# --------------------------- pure-JAX reference -------------------------------
def reference(x, params, in_pic_size):
    C0, H0, W0 = in_pic_size
    h = jnp.maximum(x @ params["w1"] + params["b1"], 0.0)
    f = jnp.maximum(h @ params["w2"] + params["b2"], 0.0)
    imgs = f.reshape(x.shape[0], C0, H0, W0)

    def convt(y, w_pt, b, act):
        w_oihw = jnp.transpose(w_pt, (1, 0, 2, 3))[:, :, ::-1, ::-1]
        out = jax.lax.conv_general_dilated(
            y, w_oihw, window_strides=(1, 1), padding=((1, 2), (1, 2)),
            lhs_dilation=(2, 2), dimension_numbers=("NCHW", "OIHW", "NCHW"))
        return act(out + b.reshape(1, -1, 1, 1))

    z = convt(imgs, params["cw1"], params["cb1"], lambda v: jnp.maximum(v, 0.0))
    return convt(z, params["cw2"], params["cb2"], jax.nn.sigmoid)


if __name__ == "__main__":
    B = 2
    in_pic_size = (4, 8, 8)                 # (C0, H0, W0)
    flatten_dim = 4 * 8 * 8                 # must equal prod(in_pic_size)
    hidden_channel = 8

    key = jax.random.PRNGKey(0)
    ks = jax.random.split(key, 9)
    params = {
        "w1": jax.random.normal(ks[0], (10, 128), jnp.float32) * 0.3,
        "b1": jax.random.normal(ks[1], (1, 128), jnp.float32) * 0.1,
        "w2": jax.random.normal(ks[2], (128, flatten_dim), jnp.float32) * 0.08,
        "b2": jax.random.normal(ks[3], (1, flatten_dim), jnp.float32) * 0.1,
        # PyTorch ConvTranspose2d weight layout: (in_channels, out_channels, kH, kW)
        "cw1": jax.random.normal(ks[4], (in_pic_size[0], hidden_channel, 3, 3), jnp.float32) * 0.2,
        "cb1": jax.random.normal(ks[5], (hidden_channel,), jnp.float32) * 0.1,
        "cw2": jax.random.normal(ks[6], (hidden_channel, 1, 3, 3), jnp.float32) * 0.2,
        "cb2": jax.random.normal(ks[7], (1,), jnp.float32) * 0.1,
    }
    x = jax.random.normal(ks[8], (B, 10), jnp.float32)

    prep = prepare_params(params, in_pic_size)   # one-time layout/weight folding (off the hot path)
    out = jax.block_until_ready(decode_from_num(x, prep, in_pic_size=in_pic_size))
    ref = jax.block_until_ready(reference(x, params, in_pic_size))

    assert out.shape == (B, 1, 4 * in_pic_size[1], 4 * in_pic_size[2]), out.shape
    # bf16 MXU operands (per perf review) with f32 accumulation: slightly looser tolerance
    # than the pure-f32 variant; outputs are sigmoid-bounded in (0, 1).
    np.testing.assert_allclose(np.asarray(out), np.asarray(ref), rtol=5e-3, atol=5e-3)
    print("KERNEL_OK")
</pallas_src>

<mosaic_0001>
module attributes {stable_mosaic.version = 11 : i64} {
  func.func @_decode_kernel(%arg0: i32, %arg1: memref<8x128xf32, #tpu.memory_space<vmem>>, %arg2: memref<128x128xbf16, #tpu.memory_space<vmem>>, %arg3: memref<1x128xf32, #tpu.memory_space<vmem>>, %arg4: memref<128x256xbf16, #tpu.memory_space<vmem>>, %arg5: memref<1x256xf32, #tpu.memory_space<vmem>>, %arg6: memref<32x384xbf16, #tpu.memory_space<vmem>>, %arg7: memref<1x128xf32, #tpu.memory_space<vmem>>, %arg8: memref<384x128xbf16, #tpu.memory_space<vmem>>, %arg9: memref<1x128xf32, #tpu.memory_space<vmem>>, %arg10: memref<64x128xf32, #tpu.memory_space<vmem>>) attributes {dimension_semantics = [#tpu.dimension_semantics<parallel>], iteration_bounds = array<i64: 1>, scalar_prefetch = 0 : i64, scratch_operands = 0 : i64, tpu.core_type = #tpu.core_type<tc>, window_params = [{transform_indices = @transform_0, window_bounds = array<i64: 8, 128>}, {pipeline_mode = #tpu.pipeline_mode<synchronous>, transform_indices = @transform_1, window_bounds = array<i64: 128, 128>}, {pipeline_mode = #tpu.pipeline_mode<synchronous>, transform_indices = @transform_2, window_bounds = array<i64: 1, 128>}, {pipeline_mode = #tpu.pipeline_mode<synchronous>, transform_indices = @transform_3, window_bounds = array<i64: 128, 256>}, {pipeline_mode = #tpu.pipeline_mode<synchronous>, transform_indices = @transform_4, window_bounds = array<i64: 1, 256>}, {pipeline_mode = #tpu.pipeline_mode<synchronous>, transform_indices = @transform_5, window_bounds = array<i64: 32, 384>}, {pipeline_mode = #tpu.pipeline_mode<synchronous>, transform_indices = @transform_6, window_bounds = array<i64: 1, 128>}, {pipeline_mode = #tpu.pipeline_mode<synchronous>, transform_indices = @transform_7, window_bounds = array<i64: 384, 128>}, {pipeline_mode = #tpu.pipeline_mode<synchronous>, transform_indices = @transform_8, window_bounds = array<i64: 1, 128>}, {transform_indices = @transform_9, window_bounds = array<i64: 64, 128>}]} {
    %c0 = arith.constant 0 : index
    %c0_0 = arith.constant 0 : index
    %0 = vector.load %arg1[%c0, %c0_0] : memref<8x128xf32, #tpu.memory_space<vmem>>, vector<8x128xf32>
    %1 = arith.truncf %0 : vector<8x128xf32> to vector<8x128xbf16>
    %c0_1 = arith.constant 0 : index
    %c0_2 = arith.constant 0 : index
    %2 = vector.load %arg2[%c0_1, %c0_2] : memref<128x128xbf16, #tpu.memory_space<vmem>>, vector<128x128xbf16>
    %cst = arith.constant dense<0.000000e+00> : vector<8x128xf32>
    %3 = tpu.matmul %1, %2, %cst {dimension_numbers = #tpu.dot_dimension_numbers<[1], [0], [0], [1], [0, 0, 1, 1], [], []>} : vector<8x128xbf16>, vector<128x128xbf16>, vector<8x128xf32> -> vector<8x128xf32>
    %c0_3 = arith.constant 0 : index
    %c0_4 = arith.constant 0 : index
    %4 = vector.load %arg3[%c0_3, %c0_4] : memref<1x128xf32, #tpu.memory_space<vmem>>, vector<1x128xf32>
    %5 = vector.broadcast %4 : vector<1x128xf32> to vector<8x128xf32>
    %6 = arith.addf %3, %5 : vector<8x128xf32>
    %cst_5 = arith.constant 0.000000e+00 : f32
    %7 = vector.broadcast %cst_5 : f32 to vector<8x128xf32>
    %8 = arith.maximumf %6, %7 : vector<8x128xf32>
    %9 = arith.truncf %8 : vector<8x128xf32> to vector<8x128xbf16>
    %c0_6 = arith.constant 0 : index
    %c0_7 = arith.constant 0 : index
    %10 = vector.load %arg4[%c0_6, %c0_7] : memref<128x256xbf16, #tpu.memory_space<vmem>>, vector<128x256xbf16>
    %cst_8 = arith.constant dense<0.000000e+00> : vector<8x256xf32>
    %11 = tpu.matmul %9, %10, %cst_8 {dimension_numbers = #tpu.dot_dimension_numbers<[1], [0], [0], [1], [0, 0, 1, 1], [], []>} : vector<8x128xbf16>, vector<128x256xbf16>, vector<8x256xf32> -> vector<8x256xf32>
    %c0_9 = arith.constant 0 : index
    %c0_10 = arith.constant 0 : index
    %12 = vector.load %arg5[%c0_9, %c0_10] : memref<1x256xf32, #tpu.memory_space<vmem>>, vector<1x256xf32>
    %13 = vector.broadcast %12 : vector<1x256xf32> to vector<8x256xf32>
    %14 = arith.addf %11, %13 : vector<8x256xf32>
    %cst_11 = arith.constant 0.000000e+00 : f32
    %15 = vector.broadcast %cst_11 : f32 to vector<8x256xf32>
    %16 = arith.maximumf %14, %15 : vector<8x256xf32>
    %17 = vector.extract_strided_slice %16 {offsets = [0, 0], sizes = [8, 32], strides = [1, 1]} : vector<8x256xf32> to vector<8x32xf32>
    %18 = vector.extract_strided_slice %16 {offsets = [0, 32], sizes = [8, 32], strides = [1, 1]} : vector<8x256xf32> to vector<8x32xf32>
    %19 = vector.extract_strided_slice %16 {offsets = [0, 64], sizes = [8, 32], strides = [1, 1]} : vector<8x256xf32> to vector<8x32xf32>
    %20 = vector.extract_strided_slice %16 {offsets = [0, 96], sizes = [8, 32], strides = [1, 1]} : vector<8x256xf32> to vector<8x32xf32>
    %21 = vector.extract_strided_slice %16 {offsets = [0, 128], sizes = [8, 32], strides = [1, 1]} : vector<8x256xf32> to vector<8x32xf32>
    %22 = vector.extract_strided_slice %16 {offsets = [0, 160], sizes = [8, 32], strides = [1, 1]} : vector<8x256xf32> to vector<8x32xf32>
    %23 = vector.extract_strided_slice %16 {offsets = [0, 192], sizes = [8, 32], strides = [1, 1]} : vector<8x256xf32> to vector<8x32xf32>
    %24 = vector.extract_strided_slice %16 {offsets = [0, 224], sizes = [8, 32], strides = [1, 1]} : vector<8x256xf32> to vector<8x32xf32>
    %25 = tpu.concatenate %17, %18, %19, %20, %21, %22, %23, %24 in 0 : vector<8x32xf32>, vector<8x32xf32>, vector<8x32xf32>, vector<8x32xf32>, vector<8x32xf32>, vector<8x32xf32>, vector<8x32xf32>, vector<8x32xf32> -> vector<64x32xf32>
    %26 = arith.truncf %25 : vector<64x32xf32> to vector<64x32xbf16>
    %c0_12 = arith.constant 0 : index
    %c0_13 = arith.constant 0 : index
    %27 = vector.load %arg6[%c0_12, %c0_13] : memref<32x384xbf16, #tpu.memory_space<vmem>>, vector<32x384xbf16>
    %cst_14 = arith.constant dense<0.000000e+00> : vector<64x384xf32>
    %28 = tpu.matmul %26, %27, %cst_14 {dimension_numbers = #tpu.dot_dimension_numbers<[1], [0], [0], [1], [0, 0, 1, 1], [], []>} : vector<64x32xbf16>, vector<32x384xbf16>, vector<64x384xf32> -> vector<64x384xf32>
    %29 = vector.extract_strided_slice %28 {offsets = [0, 0], sizes = [64, 128], strides = [1, 1]} : vector<64x384xf32> to vector<64x128xf32>
    %30 = vector.extract_strided_slice %28 {offsets = [0, 128], sizes = [64, 128], strides = [1, 1]} : vector<64x384xf32> to vector<64x128xf32>
    %31 = vector.extract_strided_slice %28 {offsets = [0, 256], sizes = [64, 128], strides = [1, 1]} : vector<64x384xf32> to vector<64x128xf32>
    %cst_15 = arith.constant 0.000000e+00 : f32
    %32 = vector.broadcast %cst_15 : f32 to vector<8x128xf32>
    %33 = vector.extract_strided_slice %30 {offsets = [8, 0], sizes = [56, 128], strides = [1, 1]} : vector<64x128xf32> to vector<56x128xf32>
    %34 = tpu.concatenate %33, %32 in 0 : vector<56x128xf32>, vector<8x128xf32> -> vector<64x128xf32>
    %c0_16 = arith.constant 0 : index
    %c0_17 = arith.constant 0 : index
    %35 = vector.load %arg7[%c0_16, %c0_17] : memref<1x128xf32, #tpu.memory_space<vmem>>, vector<1x128xf32>
    %36 = vector.broadcast %35 : vector<1x128xf32> to vector<64x128xf32>
    %37 = arith.addf %29, %36 : vector<64x128xf32>
    %cst_18 = arith.constant 0.000000e+00 : f32
    %38 = vector.broadcast %cst_18 : f32 to vector<64x128xf32>
    %39 = arith.maximumf %37, %38 : vector<64x128xf32>
    %40 = arith.addf %31, %34 : vector<64x128xf32>
    %c0_19 = arith.constant 0 : index
    %c0_20 = arith.constant 0 : index
    %41 = vector.load %arg7[%c0_19, %c0_20] : memref<1x128xf32, #tpu.memory_space<vmem>>, vector<1x128xf32>
    %42 = vector.broadcast %41 : vector<1x128xf32> to vector<64x128xf32>
    %43 = arith.addf %40, %42 : vector<64x128xf32>
    %cst_21 = arith.constant 0.000000e+00 : f32
    %44 = vector.broadcast %cst_21 : f32 to vector<64x128xf32>
    %45 = arith.maximumf %43, %44 : vector<64x128xf32>
    %46 = vector.extract_strided_slice %39 {offsets = [8, 0], sizes = [56, 128], strides = [1, 1]} : vector<64x128xf32> to vector<56x128xf32>
    %47 = tpu.concatenate %46, %32 in 0 : vector<56x128xf32>, vector<8x128xf32> -> vector<64x128xf32>
    %48 = arith.truncf %39 : vector<64x128xf32> to vector<64x128xbf16>
    %49 = arith.truncf %45 : vector<64x128xf32> to vector<64x128xbf16>
    %50 = arith.truncf %47 : vector<64x128xf32> to vector<64x128xbf16>
    %51 = tpu.concatenate %48, %49, %50 in 1 : vector<64x128xbf16>, vector<64x128xbf16>, vector<64x128xbf16> -> vector<64x384xbf16>
    %c0_22 = arith.constant 0 : index
    %c0_23 = arith.constant 0 : index
    %52 = vector.load %arg8[%c0_22, %c0_23] : memref<384x128xbf16, #tpu.memory_space<vmem>>, vector<384x128xbf16>
    %cst_24 = arith.constant dense<0.000000e+00> : vector<64x128xf32>
    %53 = tpu.matmul %51, %52, %cst_24 {dimension_numbers = #tpu.dot_dimension_numbers<[1], [0], [0], [1], [0, 0, 1, 1], [], []>} : vector<64x384xbf16>, vector<384x128xbf16>, vector<64x128xf32> -> vector<64x128xf32>
    %c0_25 = arith.constant 0 : index
    %c0_26 = arith.constant 0 : index
    %54 = vector.load %arg9[%c0_25, %c0_26] : memref<1x128xf32, #tpu.memory_space<vmem>>, vector<1x128xf32>
    %55 = vector.broadcast %54 : vector<1x128xf32> to vector<64x128xf32>
    %56 = arith.addf %53, %55 : vector<64x128xf32>
    %57 = arith.negf %56 : vector<64x128xf32>
    %58 = math.exp %57 : vector<64x128xf32>
    %cst_27 = arith.constant 1.000000e+00 : f32
    %59 = vector.broadcast %cst_27 : f32 to vector<64x128xf32>
    %60 = arith.addf %59, %58 : vector<64x128xf32>
    %61 = arith.divf %59, %60 : vector<64x128xf32>
    %c0_28 = arith.constant 0 : index
    %c0_29 = arith.constant 0 : index
    %62 = vector.load %arg10[%c0_28, %c0_29] : memref<64x128xf32, #tpu.memory_space<vmem>>, vector<64x128xf32>
    tpu.vector_store %arg10[%c0_28, %c0_29], %61 {strides = array<i32>} : memref<64x128xf32, #tpu.memory_space<vmem>>, vector<64x128xf32>,
    return
  }
  func.func @transform_0(%arg0: i32) -> (i32, i32) {
    %c0_i32 = arith.constant 0 : i32
    %c0_i32_0 = arith.constant 0 : i32
    return %arg0, %c0_i32 : i32, i32
  }
  func.func @transform_1(%arg0: i32) -> (i32, i32) {
    %c0_i32 = arith.constant 0 : i32
    %c0_i32_0 = arith.constant 0 : i32
    %c0_i32_1 = arith.constant 0 : i32
    return %c0_i32, %c0_i32_0 : i32, i32
  }
  func.func @transform_2(%arg0: i32) -> (i32, i32) {
    %c0_i32 = arith.constant 0 : i32
    %c0_i32_0 = arith.constant 0 : i32
    %c0_i32_1 = arith.constant 0 : i32
    return %c0_i32, %c0_i32_0 : i32, i32
  }
  func.func @transform_3(%arg0: i32) -> (i32, i32) {
    %c0_i32 = arith.constant 0 : i32
    %c0_i32_0 = arith.constant 0 : i32
    %c0_i32_1 = arith.constant 0 : i32
    return %c0_i32, %c0_i32_0 : i32, i32
  }
  func.func @transform_4(%arg0: i32) -> (i32, i32) {
    %c0_i32 = arith.constant 0 : i32
    %c0_i32_0 = arith.constant 0 : i32
    %c0_i32_1 = arith.constant 0 : i32
    return %c0_i32, %c0_i32_0 : i32, i32
  }
  func.func @transform_5(%arg0: i32) -> (i32, i32) {
    %c0_i32 = arith.constant 0 : i32
    %c0_i32_0 = arith.constant 0 : i32
    %c0_i32_1 = arith.constant 0 : i32
    return %c0_i32, %c0_i32_0 : i32, i32
  }
  func.func @transform_6(%arg0: i32) -> (i32, i32) {
    %c0_i32 = arith.constant 0 : i32
    %c0_i32_0 = arith.constant 0 : i32
    %c0_i32_1 = arith.constant 0 : i32
    return %c0_i32, %c0_i32_0 : i32, i32
  }
  func.func @transform_7(%arg0: i32) -> (i32, i32) {
    %c0_i32 = arith.constant 0 : i32
    %c0_i32_0 = arith.constant 0 : i32
    %c0_i32_1 = arith.constant 0 : i32
    return %c0_i32, %c0_i32_0 : i32, i32
  }
  func.func @transform_8(%arg0: i32) -> (i32, i32) {
    %c0_i32 = arith.constant 0 : i32
    %c0_i32_0 = arith.constant 0 : i32
    %c0_i32_1 = arith.constant 0 : i32
    return %c0_i32, %c0_i32_0 : i32, i32
  }
  func.func @transform_9(%arg0: i32) -> (i32, i32) {
    %c0_i32 = arith.constant 0 : i32
    %c0_i32_0 = arith.constant 0 : i32
    return %arg0, %c0_i32 : i32, i32
  }
}

</mosaic_0001>

<llo_original>
// kernel: decode_from_num.1
$region0: #{decode_from_num.1}
  #allocation0 [shape = 'u32[]', space=smem, size = 0x4, offset = 0x4, fixed_abs, tag = 'smem constant byte address 0x4 - core index']
  #allocation1 [shape = 'u32[72,128]{1,0:T(1,128)}', space=vmem, size = 0x9000, scoped, tag = 'internal scratch']
  %s0 = inlined_call_operand.vmem [shape: f32[8,128], index: 0, kind: input, shape index: {}]
  %s1 = inlined_call_operand.hbm [shape: bf16[128,128], index: 1, kind: input, shape index: {}]
  %s2 = inlined_call_operand.vmem [shape: f32[1,128], index: 2, kind: input, shape index: {}]
  %s3 = inlined_call_operand.hbm [shape: bf16[128,256], index: 3, kind: input, shape index: {}]
  %s4 = inlined_call_operand.vmem [shape: f32[1,256], index: 4, kind: input, shape index: {}]
  %s5 = inlined_call_operand.hbm [shape: bf16[32,384], index: 5, kind: input, shape index: {}]
  %s6 = inlined_call_operand.vmem [shape: f32[1,128], index: 6, kind: input, shape index: {}]
  %s7 = inlined_call_operand.hbm [shape: bf16[384,128], index: 7, kind: input, shape index: {}]
  %s8 = inlined_call_operand.vmem [shape: f32[1,128], index: 8, kind: input, shape index: {}]
  %s9 = inlined_call_operand.vmem [shape: f32[64,128], index: 9, kind: output, shape index: {}]
  %s10 = sld [smem:[#allocation0]]
  $region62: #{decode_from_num.1} parent=0
    _
  %s12 = ssub.s32 1, %s10
  %s13 = scalar_select 0, %s12, %s10
  $region1: #{decode_from_num.1} parent=0
    #allocation2 [shape = 'u8[32768]{0}', space=vmem, size = 0x8000, scoped, tag = 'input window, operand 1, single buffered']
    #allocation3 [shape = 's32[1]{0}', space=sflag, size = 0x4, scoped, tag = 'scoped memory for decode_from_num.1']
    #allocation4 [shape = 'u8[65536]{0}', space=vmem, size = 0x10000, scoped, tag = 'input window, operand 3, single buffered']
    #allocation5 [shape = 's32[1]{0}', space=sflag, size = 0x4, scoped, tag = 'scoped memory for decode_from_num.1']
    #allocation6 [shape = 'u8[24576]{0}', space=vmem, size = 0x6000, scoped, tag = 'input window, operand 5, single buffered']
    #allocation7 [shape = 'u8[98304]{0}', space=vmem, size = 0x18000, scoped, tag = 'input window, operand 7, single buffered']
    #allocation8 [shape = 's32[1]{0}', space=sflag, size = 0x4, scoped, tag = 'scoped memory for decode_from_num.1']
    %14 = vsyncpa [#allocation3], 0
    %15 = vsyncpa [#allocation5], 0
    %16 = vsyncpa [#allocation8], 0
    // Predicated region
    $region2: #{decode_from_num.1} parent=1 // pred_check
      _
    $region3: #{decode_from_num.1} parent=1 // pred_check_branch
      %18 = sbr.rel (0) target = $region5
    $region4: #{decode_from_num.1} parent=1 // pred_region
      _
    $region5: #{decode_from_num.1} parent=1 // pred_fallthru
      _
    // Predicated region
    $region6: #{decode_from_num.1} parent=1 // pred_check
      _
    $region7: #{decode_from_num.1} parent=1 // pred_check_branch
      %20 = sbr.rel (0) target = $region9
    $region8: #{decode_from_num.1} parent=1 // pred_region
      %22 = vsyncadd [#allocation3], 0
      %s23 = sshll.u32 %s1, 4
      %s24 = int_to_ptr.hbm [resolvable:$true] %s23
      %s25 = sshll.u32 [#allocation2], 4
      %s26 = int_to_ptr.vmem [resolvable:$true] %s25
      %31 = dma.hbm_to_vmem [thread:$0]  %s24, 1024, %s26, [#allocation3], 64, 64, 4
    $region9: #{decode_from_num.1} parent=1 // pred_fallthru
      _
    // Predicated region
    $region10: #{decode_from_num.1} parent=1 // pred_check
      _
    $region11: #{decode_from_num.1} parent=1 // pred_check_branch
      %33 = sbr.rel (0) target = $region13
    $region12: #{decode_from_num.1} parent=1 // pred_region
      _
    $region13: #{decode_from_num.1} parent=1 // pred_fallthru
      _
    // Predicated region
    $region14: #{decode_from_num.1} parent=1 // pred_check
      _
    $region15: #{decode_from_num.1} parent=1 // pred_check_branch
      %35 = sbr.rel (0) target = $region17
    $region16: #{decode_from_num.1} parent=1 // pred_region
      %37 = vsyncadd [#allocation5], 0
      %s38 = sshll.u32 %s3, 4
      %s39 = int_to_ptr.hbm [resolvable:$true] %s38
      %s40 = sshll.u32 [#allocation4], 4
      %s41 = int_to_ptr.vmem [resolvable:$true] %s40
      %46 = dma.hbm_to_vmem [thread:$0]  %s39, 2048, %s41, [#allocation5], 128, 128, 8
    $region17: #{decode_from_num.1} parent=1 // pred_fallthru
      _
    // Predicated region
    $region18: #{decode_from_num.1} parent=1 // pred_check
      _
    $region19: #{decode_from_num.1} parent=1 // pred_check_branch
      %48 = sbr.rel (0) target = $region21
    $region20: #{decode_from_num.1} parent=1 // pred_region
      _
    $region21: #{decode_from_num.1} parent=1 // pred_fallthru
      _
    // Predicated region
    $region22: #{decode_from_num.1} parent=1 // pred_check
      _
    $region23: #{decode_from_num.1} parent=1 // pred_check_branch
      %50 = sbr.rel (0) target = $region25
    $region24: #{decode_from_num.1} parent=1 // pred_region
      %52 = vsyncadd [#allocation5], 0
      %s53 = sshll.u32 %s5, 4
      %s54 = int_to_ptr.hbm [resolvable:$true] %s53
      %s55 = sshll.u32 [#allocation6], 4
      %s56 = int_to_ptr.vmem [resolvable:$true] %s55
      %61 = dma.hbm_to_vmem [thread:$0]  %s54, 768, %s56, [#allocation5], 192, 192, 12
    $region25: #{decode_from_num.1} parent=1 // pred_fallthru
      _
    // Predicated region
    $region26: #{decode_from_num.1} parent=1 // pred_check
      _
    $region27: #{decode_from_num.1} parent=1 // pred_check_branch
      %63 = sbr.rel (0) target = $region29
    $region28: #{decode_from_num.1} parent=1 // pred_region
      _
    $region29: #{decode_from_num.1} parent=1 // pred_fallthru
      _
    // Predicated region
    $region30: #{decode_from_num.1} parent=1 // pred_check
      _
    $region31: #{decode_from_num.1} parent=1 // pred_check_branch
      %65 = sbr.rel (0) target = $region33
    $region32: #{decode_from_num.1} parent=1 // pred_region
      %67 = vsyncadd [#allocation8], 0
      %s68 = sshll.u32 %s7, 4
      %s69 = int_to_ptr.hbm [resolvable:$true] %s68
      %s70 = sshll.u32 [#allocation7], 4
      %s71 = int_to_ptr.vmem [resolvable:$true] %s70
      %76 = dma.hbm_to_vmem [thread:$0]  %s69, 3072, %s71, [#allocation8], 64, 64, 4
    $region33: #{decode_from_num.1} parent=1 // pred_fallthru
      _
    // Predicated region
    $region34: #{decode_from_num.1} parent=1 // pred_check
      _
    $region35: #{decode_from_num.1} parent=1 // pred_check_branch
      %78 = sbr.rel (0) target = $region37
    $region36: #{decode_from_num.1} parent=1 // pred_region
      _
    $region37: #{decode_from_num.1} parent=1 // pred_fallthru
      _
    // Predicated region
    $region38: #{decode_from_num.1} parent=1 // pred_check
      _
    $region39: #{decode_from_num.1} parent=1 // pred_check_branch
      %80 = sbr.rel (0) target = $region41
    $region40: #{decode_from_num.1} parent=1 // pred_region
      %82 = dma.done [#allocation3], 1024
    $region41: #{decode_from_num.1} parent=1 // pred_fallthru
      _
    // Predicated region
    $region42: #{decode_from_num.1} parent=1 // pred_check
      _
    $region43: #{decode_from_num.1} parent=1 // pred_check_branch
      %84 = sbr.rel (0) target = $region45
    $region44: #{decode_from_num.1} parent=1 // pred_region
      %86 = dma.done [#allocation5], 2048
    $region45: #{decode_from_num.1} parent=1 // pred_fallthru
      _
    // Predicated region
    $region46: #{decode_from_num.1} parent=1 // pred_check
      _
    $region47: #{decode_from_num.1} parent=1 // pred_check_branch
      %88 = sbr.rel (0) target = $region49
    $region48: #{decode_from_num.1} parent=1 // pred_region
      %90 = dma.done [#allocation5], 768
    $region49: #{decode_from_num.1} parent=1 // pred_fallthru
      _
    // Predicated region
    $region50: #{decode_from_num.1} parent=1 // pred_check
      _
    $region51: #{decode_from_num.1} parent=1 // pred_check_branch
      %92 = sbr.rel (0) target = $region53
    $region52: #{decode_from_num.1} parent=1 // pred_region
      %94 = dma.done [#allocation8], 3072
    $region53: #{decode_from_num.1} parent=1 // pred_fallthru
      _
    %v96 = vld [vmem:[%s0] sm:$0xff]
    %v97 = vpack.c.bf16 %v96, %v96
    %v98 = vld [vmem:[#allocation2] sm:$0xf]
    %v99 = vld [vmem:[#allocation2 + $0x4] sm:$0xf]
    %v100 = vld [vmem:[#allocation2 + $0x8] sm:$0xf]
    %v101 = vld [vmem:[#allocation2 + $0xc] sm:$0xf]
    %v102 = vld [vmem:[#allocation2 + $0x10] sm:$0xf]
    %v103 = vld [vmem:[#allocation2 + $0x14] sm:$0xf]
    %v104 = vld [vmem:[#allocation2 + $0x18] sm:$0xf]
    %v105 = vld [vmem:[#allocation2 + $0x1c] sm:$0xf]
    %v106 = vld [vmem:[#allocation2 + $0x20] sm:$0xf]
    %v107 = vld [vmem:[#allocation2 + $0x24] sm:$0xf]
    %v108 = vld [vmem:[#allocation2 + $0x28] sm:$0xf]
    %v109 = vld [vmem:[#allocation2 + $0x2c] sm:$0xf]
    %v110 = vld [vmem:[#allocation2 + $0x30] sm:$0xf]
    %v111 = vld [vmem:[#allocation2 + $0x34] sm:$0xf]
    %v112 = vld [vmem:[#allocation2 + $0x38] sm:$0xf]
    %v113 = vld [vmem:[#allocation2 + $0x3c] sm:$0xf]
    %v114 = vld [vmem:[%s2] sm:$0x1]
    %v116 = vperm.slane %v114, 0
    %v134 = vunpack.c.l.b16 %v98
    %v135 = vunpack.c.l.b16 %v99
    %v136 = vunpack.c.l.b16 %v100
    %v137 = vunpack.c.l.b16 %v101
    %v138 = vunpack.c.l.b16 %v102
    %v139 = vunpack.c.l.b16 %v103
    %v140 = vunpack.c.l.b16 %v104
    %v141 = vunpack.c.l.b16 %v105
    %v142 = vunpack.c.l.b16 %v106
    %v143 = vunpack.c.l.b16 %v107
    %v144 = vunpack.c.l.b16 %v108
    %v145 = vunpack.c.l.b16 %v109
    %v146 = vunpack.c.l.b16 %v110
    %v147 = vunpack.c.l.b16 %v111
    %v148 = vunpack.c.l.b16 %v112
    %v149 = vunpack.c.l.b16 %v113
    %v150 = vpack.c.b16 %v135, %v134
    %v151 = vpack.c.b16 %v137, %v136
    %v152 = vpack.c.b16 %v139, %v138
    %v153 = vpack.c.b16 %v141, %v140
    %v154 = vpack.c.b16 %v143, %v142
    %v155 = vpack.c.b16 %v145, %v144
    %v156 = vpack.c.b16 %v147, %v146
    %v157 = vpack.c.b16 %v149, %v148
    %166 = vmatpush.bf16.msra.mxu0 %v157
    %167 = vmatpush.bf16.msra.mxu0 %v156
    %168 = vmatpush.bf16.msra.mxu0 %v155
    %169 = vmatpush.bf16.msra.mxu0 %v154
    %170 = vmatpush.bf16.msra.mxu0 %v153
    %171 = vmatpush.bf16.msra.mxu0 %v152
    %172 = vmatpush.bf16.msra.mxu0 %v151
    %173 = vmatpush.bf16.msra.mxu0 %v150
    %174 = vmatmul.bf16.gmra.mxu0 %v97
    %v175 = vpop.f32.mrf.mxu0
    %v176 = vadd.f32 %v116, %v175
    %v177 = vpop.f32.mrf.mxu0
    %178 = vdwg.mxu0
    %v179 = vmax.f32 %v176, 0.0
    %v180 = vpack.c.bf16 %v179, %v179
    %v181 = vld [vmem:[#allocation4] sm:$0xff]
    %v182 = vld [vmem:[#allocation4 + $0x8] sm:$0xff]
    %v183 = vld [vmem:[#allocation4 + $0x10] sm:$0xff]
    %v184 = vld [vmem:[#allocation4 + $0x18] sm:$0xff]
    %v185 = vld [vmem:[#allocation4 + $0x20] sm:$0xff]
    %v186 = vld [vmem:[#allocation4 + $0x28] sm:$0xff]
    %v187 = vld [vmem:[#allocation4 + $0x30] sm:$0xff]
    %v188 = vld [vmem:[#allocation4 + $0x38] sm:$0xff]
    %v189 = vld [vmem:[#allocation4 + $0x40] sm:$0xff]
    %v190 = vld [vmem:[#allocation4 + $0x48] sm:$0xff]
    %v191 = vld [vmem:[#allocation4 + $0x50] sm:$0xff]
    %v192 = vld [vmem:[#allocation4 + $0x58] sm:$0xff]
    %v193 = vld [vmem:[#allocation4 + $0x60] sm:$0xff]
    %v194 = vld [vmem:[#allocation4 + $0x68] sm:$0xff]
    %v195 = vld [vmem:[#allocation4 + $0x70] sm:$0xff]
    %v196 = vld [vmem:[#allocation4 + $0x78] sm:$0xff]
    %v197 = vld [vmem:[%s4] sm:$0x3]
    %v199 = vperm.slane %v197, 0
    %v200 = vperm.slane %v197, 1
    %v219 = vunpack.c.l.b16 %v181
    %v220 = vunpack.c.h.b16 %v181
    %v221 = vunpack.c.l.b16 %v182
    %v222 = vunpack.c.h.b16 %v182
    %v223 = vunpack.c.l.b16 %v183
    %v224 = vunpack.c.h.b16 %v183
    %v225 = vunpack.c.l.b16 %v184
    %v226 = vunpack.c.h.b16 %v184
    %v227 = vunpack.c.l.b16 %v185
    %v228 = vunpack.c.h.b16 %v185
    %v229 = vunpack.c.l.b16 %v186
    %v230 = vunpack.c.h.b16 %v186
    %v231 = vunpack.c.l.b16 %v187
    %v232 = vunpack.c.h.b16 %v187
    %v233 = vunpack.c.l.b16 %v188
    %v234 = vunpack.c.h.b16 %v188
    %v235 = vunpack.c.l.b16 %v189
    %v236 = vunpack.c.h.b16 %v189
    %v237 = vunpack.c.l.b16 %v190
    %v238 = vunpack.c.h.b16 %v190
    %v239 = vunpack.c.l.b16 %v191
    %v240 = vunpack.c.h.b16 %v191
    %v241 = vunpack.c.l.b16 %v192
    %v242 = vunpack.c.h.b16 %v192
    %v243 = vunpack.c.l.b16 %v193
    %v244 = vunpack.c.h.b16 %v193
    %v245 = vunpack.c.l.b16 %v194
    %v246 = vunpack.c.h.b16 %v194
    %v247 = vunpack.c.l.b16 %v195
    %v248 = vunpack.c.h.b16 %v195
    %v249 = vunpack.c.l.b16 %v196
    %v250 = vunpack.c.h.b16 %v196
    %v251 = vpack.c.b16 %v221, %v219
    %v252 = vpack.c.b16 %v222, %v220
    %v253 = vpack.c.b16 %v225, %v223
    %v254 = vpack.c.b16 %v226, %v224
    %v255 = vpack.c.b16 %v229, %v227
    %v256 = vpack.c.b16 %v230, %v228
    %v257 = vpack.c.b16 %v233, %v231
    %v258 = vpack.c.b16 %v234, %v232
    %v259 = vpack.c.b16 %v237, %v235
    %v260 = vpack.c.b16 %v238, %v236
    %v261 = vpack.c.b16 %v241, %v239
    %v262 = vpack.c.b16 %v242, %v240
    %v263 = vpack.c.b16 %v245, %v243
    %v264 = vpack.c.b16 %v246, %v244
    %v265 = vpack.c.b16 %v249, %v247
    %v266 = vpack.c.b16 %v250, %v248
    %283 = vmatpush.bf16.msra.mxu0 %v265
    %284 = vmatpush.bf16.msra.mxu0 %v263
    %285 = vmatpush.bf16.msra.mxu0 %v261
    %286 = vmatpush.bf16.msra.mxu0 %v259
    %287 = vmatpush.bf16.msra.mxu0 %v257
    %288 = vmatpush.bf16.msra.mxu0 %v255
    %289 = vmatpush.bf16.msra.mxu0 %v253
    %290 = vmatpush.bf16.msra.mxu0 %v251
    %291 = vmatmul.bf16.gmra.mxu0 %v180
    %v292 = vpop.f32.mrf.mxu0
    %v293 = vadd.f32 %v199, %v292
    %v294 = vpop.f32.mrf.mxu0
    %295 = vdwg.mxu0
    %296 = vmatpush.bf16.msra.mxu0 %v266
    %297 = vmatpush.bf16.msra.mxu0 %v264
    %298 = vmatpush.bf16.msra.mxu0 %v262
    %299 = vmatpush.bf16.msra.mxu0 %v260
    %300 = vmatpush.bf16.msra.mxu0 %v258
    %301 = vmatpush.bf16.msra.mxu0 %v256
    %302 = vmatpush.bf16.msra.mxu0 %v254
    %303 = vmatpush.bf16.msra.mxu0 %v252
    %304 = vmatmul.bf16.gmra.mxu0 %v180
    %v305 = vpop.f32.mrf.mxu0
    %v306 = vadd.f32 %v200, %v305
    %v307 = vpop.f32.mrf.mxu0
    %308 = vdwg.mxu0
    %v309 = vmax.f32 %v293, 0.0
    %v310 = vmax.f32 %v306, 0.0
    %312 = vrot.lane.b32.xlu0 %v309, 96
    %v313 = vpop.permute.xlu0 %312
    %315 = vrot.lane.b32.xlu0 %v309, 64
    %v316 = vpop.permute.xlu0 %315
    %318 = vrot.lane.b32.xlu0 %v309, 32
    %v319 = vpop.permute.xlu0 %318
    %322 = vrot.lane.b32.xlu0 %v310, 96
    %v323 = vpop.permute.xlu0 %322
    %325 = vrot.lane.b32.xlu0 %v310, 64
    %v326 = vpop.permute.xlu0 %325
    %328 = vrot.lane.b32.xlu0 %v310, 32
    %v329 = vpop.permute.xlu0 %328
    %v331 = vpack.c.bf16 %v313, %v309
    %v332 = vpack.c.bf16 %v319, %v316
    %v333 = vpack.c.bf16 %v323, %v310
    %v334 = vpack.c.bf16 %v329, %v326
    %v335 = vld [vmem:[#allocation6] sm:$0xff]
    %v336 = vld [vmem:[#allocation6 + $0x8] sm:$0xf]
    %v337 = vld [vmem:[#allocation6 + $0xc] sm:$0xff]
    %v338 = vld [vmem:[#allocation6 + $0x14] sm:$0xf]
    %v339 = vld [vmem:[#allocation6 + $0x18] sm:$0xff]
    %v340 = vld [vmem:[#allocation6 + $0x20] sm:$0xf]
    %v341 = vld [vmem:[#allocation6 + $0x24] sm:$0xff]
    %v342 = vld [vmem:[#allocation6 + $0x2c] sm:$0xf]
    %v351 = vunpack.c.l.b16 %v335
    %v352 = vunpack.c.h.b16 %v335
    %v353 = vunpack.c.l.b16 %v336
    %v354 = vunpack.c.l.b16 %v337
    %v355 = vunpack.c.h.b16 %v337
    %v356 = vunpack.c.l.b16 %v338
    %v357 = vunpack.c.l.b16 %v339
    %v358 = vunpack.c.h.b16 %v339
    %v359 = vunpack.c.l.b16 %v340
    %v360 = vunpack.c.l.b16 %v341
    %v361 = vunpack.c.h.b16 %v341
    %v362 = vunpack.c.l.b16 %v342
    %v363 = vpack.c.b16 %v354, %v351
    %v364 = vpack.c.b16 %v355, %v352
    %v365 = vpack.c.b16 %v356, %v353
    %v366 = vpack.c.b16 %v360, %v357
    %v367 = vpack.c.b16 %v361, %v358
    %v368 = vpack.c.b16 %v362, %v359
    %vm375 = vcmask 261120
    %v377 = vsel %vm375, %v331, 0
    %v380 = vsel %vm375, %v332, 0
    %v383 = vsel %vm375, %v333, 0
    %v386 = vsel %vm375, %v334, 0
    %388 = vmatpush.bf16.msra.mxu0 0
    %389 = vmatpush.bf16.msra.mxu0 0
    %390 = vmatpush.bf16.msra.mxu0 0
    %391 = vmatpush.bf16.msra.mxu0 0
    %392 = vmatpush.bf16.msra.mxu0 0
    %393 = vmatpush.bf16.msra.mxu0 0
    %394 = vmatpush.bf16.msra.mxu0 %v366
    %395 = vmatpush.bf16.msra.mxu0 %v363
    %396 = vmatmul.bf16.gmra.mxu0 %v377
    %v397 = vpop.f32.mrf.mxu0
    %v398 = vadd.f32 0.0, %v397
    %v399 = vpop.f32.mrf.mxu0
    %v400 = vadd.f32 0.0, %v399
    %401 = vmatmul.bf16.gmra.mxu0 %v380
    %v402 = vpop.f32.mrf.mxu0
    %v403 = vadd.f32 0.0, %v402
    %v404 = vpop.f32.mrf.mxu0
    %v405 = vadd.f32 0.0, %v404
    %406 = vmatmul.bf16.gmra.mxu0 %v383
    %v407 = vpop.f32.mrf.mxu0
    %v408 = vadd.f32 0.0, %v407
    %v409 = vpop.f32.mrf.mxu0
    %v410 = vadd.f32 0.0, %v409
    %411 = vmatmul.bf16.gmra.mxu0 %v386
    %v412 = vpop.f32.mrf.mxu0
    %v413 = vadd.f32 0.0, %v412
    %v414 = vpop.f32.mrf.mxu0
    %v415 = vadd.f32 0.0, %v414
    %416 = vdwg.mxu0
    %417 = vmatpush.bf16.msra.mxu0 0
    %418 = vmatpush.bf16.msra.mxu0 0
    %419 = vmatpush.bf16.msra.mxu0 0
    %420 = vmatpush.bf16.msra.mxu0 0
    %421 = vmatpush.bf16.msra.mxu0 0
    %422 = vmatpush.bf16.msra.mxu0 0
    %423 = vmatpush.bf16.msra.mxu0 %v367
    %424 = vmatpush.bf16.msra.mxu0 %v364
    %425 = vmatmul.bf16.gmra.mxu0 %v377
    %v426 = vpop.f32.mrf.mxu0
    %v427 = vpop.f32.mrf.mxu0
    %v428 = vadd.f32 0.0, %v427
    %429 = vmatmul.bf16.gmra.mxu0 %v380
    %v430 = vpop.f32.mrf.mxu0
    %v431 = vadd.f32 0.0, %v430
    %v432 = vpop.f32.mrf.mxu0
    %v433 = vadd.f32 0.0, %v432
    %434 = vmatmul.bf16.gmra.mxu0 %v383
    %v435 = vpop.f32.mrf.mxu0
    %v436 = vadd.f32 0.0, %v435
    %v437 = vpop.f32.mrf.mxu0
    %v438 = vadd.f32 0.0, %v437
    %439 = vmatmul.bf16.gmra.mxu0 %v386
    %v440 = vpop.f32.mrf.mxu0
    %v441 = vadd.f32 0.0, %v440
    %v442 = vpop.f32.mrf.mxu0
    %v443 = vadd.f32 0.0, %v442
    %444 = vdwg.mxu0
    %445 = vmatpush.bf16.msra.mxu0 0
    %446 = vmatpush.bf16.msra.mxu0 0
    %447 = vmatpush.bf16.msra.mxu0 0
    %448 = vmatpush.bf16.msra.mxu0 0
    %449 = vmatpush.bf16.msra.mxu0 0
    %450 = vmatpush.bf16.msra.mxu0 0
    %451 = vmatpush.bf16.msra.mxu0 %v368
    %452 = vmatpush.bf16.msra.mxu0 %v365
    %453 = vmatmul.bf16.gmra.mxu0 %v377
    %v454 = vpop.f32.mrf.mxu0
    %v455 = vadd.f32 0.0, %v454
    %v456 = vpop.f32.mrf.mxu0
    %v457 = vadd.f32 0.0, %v456
    %458 = vmatmul.bf16.gmra.mxu0 %v380
    %v459 = vpop.f32.mrf.mxu0
    %v460 = vadd.f32 0.0, %v459
    %v461 = vpop.f32.mrf.mxu0
    %v462 = vadd.f32 0.0, %v461
    %463 = vmatmul.bf16.gmra.mxu0 %v383
    %v464 = vpop.f32.mrf.mxu0
    %v465 = vadd.f32 0.0, %v464
    %v466 = vpop.f32.mrf.mxu0
    %v467 = vadd.f32 0.0, %v466
    %468 = vmatmul.bf16.gmra.mxu0 %v386
    %v469 = vpop.f32.mrf.mxu0
    %v470 = vadd.f32 0.0, %v469
    %v471 = vpop.f32.mrf.mxu0
    %v472 = vadd.f32 0.0, %v471
    %473 = vdwg.mxu0
    %v474 = vld [vmem:[%s6] sm:$0x1]
    %v476 = vperm.slane %v474, 0
    %v478 = vadd.f32 %v398, %v476
    %v479 = vadd.f32 %v400, %v476
    %v480 = vadd.f32 %v403, %v476
    %v481 = vadd.f32 %v405, %v476
    %v482 = vadd.f32 %v408, %v476
    %v483 = vadd.f32 %v410, %v476
    %v484 = vadd.f32 %v413, %v476
    %v485 = vadd.f32 %v415, %v476
    %v486 = vmax.f32 %v478, 0.0
    %v487 = vmax.f32 %v479, 0.0
    %v488 = vmax.f32 %v480, 0.0
    %v489 = vmax.f32 %v481, 0.0
    %v490 = vmax.f32 %v482, 0.0
    %v491 = vmax.f32 %v483, 0.0
    %v492 = vmax.f32 %v484, 0.0
    %v493 = vmax.f32 %v485, 0.0
    %v494 = vadd.f32 %v455, %v428
    %v495 = vadd.f32 %v457, %v431
    %v496 = vadd.f32 %v460, %v433
    %v497 = vadd.f32 %v462, %v436
    %v498 = vadd.f32 %v465, %v438
    %v499 = vadd.f32 %v467, %v441
    %v500 = vadd.f32 %v470, %v443
    %v501 = vadd.f32 %v472, 0.0
    %v502 = vadd.f32 %v494, %v476
    %v503 = vadd.f32 %v495, %v476
    %v504 = vadd.f32 %v496, %v476
    %v505 = vadd.f32 %v497, %v476
    %v506 = vadd.f32 %v498, %v476
    %v507 = vadd.f32 %v499, %v476
    %v508 = vadd.f32 %v500, %v476
    %v509 = vadd.f32 %v501, %v476
    %v510 = vmax.f32 %v502, 0.0
    %v511 = vmax.f32 %v503, 0.0
    %v512 = vmax.f32 %v504, 0.0
    %v513 = vmax.f32 %v505, 0.0
    %v514 = vmax.f32 %v506, 0.0
    %v515 = vmax.f32 %v507, 0.0
    %v516 = vmax.f32 %v508, 0.0
    %v517 = vmax.f32 %v509, 0.0
    %v518 = vpack.c.bf16 %v486, %v486
    %v519 = vpack.c.bf16 %v487, %v487
    %v520 = vpack.c.bf16 %v488, %v488
    %v521 = vpack.c.bf16 %v489, %v489
    %v522 = vpack.c.bf16 %v490, %v490
    %v523 = vpack.c.bf16 %v491, %v491
    %v524 = vpack.c.bf16 %v492, %v492
    %v525 = vpack.c.bf16 %v493, %v493
    %v526 = vpack.c.bf16 %v510, %v510
    %v527 = vpack.c.bf16 %v511, %v511
    %v528 = vpack.c.bf16 %v512, %v512
    %v529 = vpack.c.bf16 %v513, %v513
    %v530 = vpack.c.bf16 %v514, %v514
    %v531 = vpack.c.bf16 %v515, %v515
    %v532 = vpack.c.bf16 %v516, %v516
    %v533 = vpack.c.bf16 %v517, %v517
    %v534 = vpack.c.bf16 0.0, 0.0
    %v543 = vunpack.c.l.b16 %v518
    %v544 = vunpack.c.l.b16 %v519
    %v545 = vunpack.c.l.b16 %v520
    %v546 = vunpack.c.l.b16 %v521
    %v547 = vunpack.c.l.b16 %v522
    %v548 = vunpack.c.l.b16 %v523
    %v549 = vunpack.c.l.b16 %v524
    %v550 = vunpack.c.l.b16 %v525
    %v551 = vpack.c.b16 %v544, %v543
    %v552 = vpack.c.b16 %v546, %v545
    %v553 = vpack.c.b16 %v548, %v547
    %v554 = vpack.c.b16 %v550, %v549
    %v567 = vunpack.c.l.b16 %v526
    %v568 = vunpack.c.l.b16 %v527
    %v569 = vunpack.c.l.b16 %v528
    %v570 = vunpack.c.l.b16 %v529
    %v571 = vunpack.c.l.b16 %v530
    %v572 = vunpack.c.l.b16 %v531
    %v573 = vunpack.c.l.b16 %v532
    %v574 = vunpack.c.l.b16 %v533
    %v575 = vpack.c.b16 %v568, %v567
    %v576 = vpack.c.b16 %v570, %v569
    %v577 = vpack.c.b16 %v572, %v571
    %v578 = vpack.c.b16 %v574, %v573
    %v584 = vunpack.c.l.b16 %v534
    %v585 = vpack.c.b16 %v545, %v544
    %v586 = vpack.c.b16 %v547, %v546
    %v587 = vpack.c.b16 %v549, %v548
    %v588 = vpack.c.b16 %v584, %v550
    %v593 = vld [vmem:[#allocation7] sm:$0xf]
    %v594 = vld [vmem:[#allocation7 + $0x4] sm:$0xf]
    %v595 = vld [vmem:[#allocation7 + $0x8] sm:$0xf]
    %v596 = vld [vmem:[#allocation7 + $0xc] sm:$0xf]
    %v597 = vld [vmem:[#allocation7 + $0x10] sm:$0xf]
    %v598 = vld [vmem:[#allocation7 + $0x14] sm:$0xf]
    %v599 = vld [vmem:[#allocation7 + $0x18] sm:$0xf]
    %v600 = vld [vmem:[#allocation7 + $0x1c] sm:$0xf]
    %v601 = vld [vmem:[#allocation7 + $0x20] sm:$0xf]
    %v602 = vld [vmem:[#allocation7 + $0x24] sm:$0xf]
    %v603 = vld [vmem:[#allocation7 + $0x28] sm:$0xf]
    %v604 = vld [vmem:[#allocation7 + $0x2c] sm:$0xf]
    %v605 = vld [vmem:[#allocation7 + $0x30] sm:$0xf]
    %v606 = vld [vmem:[#allocation7 + $0x34] sm:$0xf]
    %v607 = vld [vmem:[#allocation7 + $0x38] sm:$0xf]
    %v608 = vld [vmem:[#allocation7 + $0x3c] sm:$0xf]
    %v609 = vld [vmem:[#allocation7 + $0x40] sm:$0xf]
    %v610 = vld [vmem:[#allocation7 + $0x44] sm:$0xf]
    %v611 = vld [vmem:[#allocation7 + $0x48] sm:$0xf]
    %v612 = vld [vmem:[#allocation7 + $0x4c] sm:$0xf]
    %v613 = vld [vmem:[#allocation7 + $0x50] sm:$0xf]
    %v614 = vld [vmem:[#allocation7 + $0x54] sm:$0xf]
    %v615 = vld [vmem:[#allocation7 + $0x58] sm:$0xf]
    %v616 = vld [vmem:[#allocation7 + $0x5c] sm:$0xf]
    %v617 = vld [vmem:[#allocation7 + $0x60] sm:$0xf]
    %v618 = vld [vmem:[#allocation7 + $0x64] sm:$0xf]
    %v619 = vld [vmem:[#allocation7 + $0x68] sm:$0xf]
    %v620 = vld [vmem:[#allocation7 + $0x6c] sm:$0xf]
    %v621 = vld [vmem:[#allocation7 + $0x70] sm:$0xf]
    %v622 = vld [vmem:[#allocation7 + $0x74] sm:$0xf]
    %v623 = vld [vmem:[#allocation7 + $0x78] sm:$0xf]
    %v624 = vld [vmem:[#allocation7 + $0x7c] sm:$0xf]
    %v625 = vld [vmem:[#allocation7 + $0x80] sm:$0xf]
    %v626 = vld [vmem:[#allocation7 + $0x84] sm:$0xf]
    %v627 = vld [vmem:[#allocation7 + $0x88] sm:$0xf]
    %v628 = vld [vmem:[#allocation7 + $0x8c] sm:$0xf]
    %v629 = vld [vmem:[#allocation7 + $0x90] sm:$0xf]
    %v630 = vld [vmem:[#allocation7 + $0x94] sm:$0xf]
    %v631 = vld [vmem:[#allocation7 + $0x98] sm:$0xf]
    %v632 = vld [vmem:[#allocation7 + $0x9c] sm:$0xf]
    %v633 = vld [vmem:[#allocation7 + $0xa0] sm:$0xf]
    %v634 = vld [vmem:[#allocation7 + $0xa4] sm:$0xf]
    %v635 = vld [vmem:[#allocation7 + $0xa8] sm:$0xf]
    %v636 = vld [vmem:[#allocation7 + $0xac] sm:$0xf]
    %v637 = vld [vmem:[#allocation7 + $0xb0] sm:$0xf]
    %v638 = vld [vmem:[#allocation7 + $0xb4] sm:$0xf]
    %v639 = vld [vmem:[#allocation7 + $0xb8] sm:$0xf]
    %v640 = vld [vmem:[#allocation7 + $0xbc] sm:$0xf]
    %v641 = vld [vmem:[%s8] sm:$0x1]
    %v643 = vperm.slane %v641, 0
    %v693 = vunpack.c.l.b16 %v593
    %v694 = vunpack.c.l.b16 %v594
    %v695 = vunpack.c.l.b16 %v595
    %v696 = vunpack.c.l.b16 %v596
    %v697 = vunpack.c.l.b16 %v597
    %v698 = vunpack.c.l.b16 %v598
    %v699 = vunpack.c.l.b16 %v599
    %v700 = vunpack.c.l.b16 %v600
    %v701 = vunpack.c.l.b16 %v601
    %v702 = vunpack.c.l.b16 %v602
    %v703 = vunpack.c.l.b16 %v603
    %v704 = vunpack.c.l.b16 %v604
    %v705 = vunpack.c.l.b16 %v605
    %v706 = vunpack.c.l.b16 %v606
    %v707 = vunpack.c.l.b16 %v607
    %v708 = vunpack.c.l.b16 %v608
    %v709 = vunpack.c.l.b16 %v609
    %v710 = vunpack.c.l.b16 %v610
    %v711 = vunpack.c.l.b16 %v611
    %v712 = vunpack.c.l.b16 %v612
    %v713 = vunpack.c.l.b16 %v613
    %v714 = vunpack.c.l.b16 %v614
    %v715 = vunpack.c.l.b16 %v615
    %v716 = vunpack.c.l.b16 %v616
    %v717 = vunpack.c.l.b16 %v617
    %v718 = vunpack.c.l.b16 %v618
    %v719 = vunpack.c.l.b16 %v619
    %v720 = vunpack.c.l.b16 %v620
    %v721 = vunpack.c.l.b16 %v621
    %v722 = vunpack.c.l.b16 %v622
    %v723 = vunpack.c.l.b16 %v623
    %v724 = vunpack.c.l.b16 %v624
    %v725 = vunpack.c.l.b16 %v625
    %v726 = vunpack.c.l.b16 %v626
    %v727 = vunpack.c.l.b16 %v627
    %v728 = vunpack.c.l.b16 %v628
    %v729 = vunpack.c.l.b16 %v629
    %v730 = vunpack.c.l.b16 %v630
    %v731 = vunpack.c.l.b16 %v631
    %v732 = vunpack.c.l.b16 %v632
    %v733 = vunpack.c.l.b16 %v633
    %v734 = vunpack.c.l.b16 %v634
    %v735 = vunpack.c.l.b16 %v635
    %v736 = vunpack.c.l.b16 %v636
    %v737 = vunpack.c.l.b16 %v637
    %v738 = vunpack.c.l.b16 %v638
    %v739 = vunpack.c.l.b16 %v639
    %v740 = vunpack.c.l.b16 %v640
    %v741 = vpack.c.b16 %v694, %v693
    %v742 = vpack.c.b16 %v696, %v695
    %v743 = vpack.c.b16 %v698, %v697
    %v744 = vpack.c.b16 %v700, %v699
    %v745 = vpack.c.b16 %v702, %v701
    %v746 = vpack.c.b16 %v704, %v703
    %v747 = vpack.c.b16 %v706, %v705
    %v748 = vpack.c.b16 %v708, %v707
    %v749 = vpack.c.b16 %v710, %v709
    %v750 = vpack.c.b16 %v712, %v711
    %v751 = vpack.c.b16 %v714, %v713
    %v752 = vpack.c.b16 %v716, %v715
    %v753 = vpack.c.b16 %v718, %v717
    %v754 = vpack.c.b16 %v720, %v719
    %v755 = vpack.c.b16 %v722, %v721
    %v756 = vpack.c.b16 %v724, %v723
    %v757 = vpack.c.b16 %v726, %v725
    %v758 = vpack.c.b16 %v728, %v727
    %v759 = vpack.c.b16 %v730, %v729
    %v760 = vpack.c.b16 %v732, %v731
    %v761 = vpack.c.b16 %v734, %v733
    %v762 = vpack.c.b16 %v736, %v735
    %v763 = vpack.c.b16 %v738, %v737
    %v764 = vpack.c.b16 %v740, %v739
    %789 = vmatpush.bf16.msra.mxu0 %v748
    %790 = vmatpush.bf16.msra.mxu0 %v747
    %791 = vmatpush.bf16.msra.mxu0 %v746
    %792 = vmatpush.bf16.msra.mxu0 %v745
    %793 = vmatpush.bf16.msra.mxu0 %v744
    %794 = vmatpush.bf16.msra.mxu0 %v743
    %795 = vmatpush.bf16.msra.mxu0 %v742
    %796 = vmatpush.bf16.msra.mxu0 %v741
    %797 = vmatmul.bf16.gmra.mxu0 %v551
    %v798 = vpop.f32.mrf.mxu0
    %v799 = vadd.f32 %v643, %v798
    %v800 = vpop.f32.mrf.mxu0
    %v801 = vadd.f32 %v643, %v800
    %802 = vmatmul.bf16.gmra.mxu0 %v552
    %v803 = vpop.f32.mrf.mxu0
    %v804 = vadd.f32 %v643, %v803
    %v805 = vpop.f32.mrf.mxu0
    %v806 = vadd.f32 %v643, %v805
    %807 = vmatmul.bf16.gmra.mxu0 %v553
    %v808 = vpop.f32.mrf.mxu0
    %v809 = vadd.f32 %v643, %v808
    %v810 = vpop.f32.mrf.mxu0
    %v811 = vadd.f32 %v643, %v810
    %812 = vmatmul.bf16.gmra.mxu0 %v554
    %v813 = vpop.f32.mrf.mxu0
    %v814 = vadd.f32 %v643, %v813
    %v815 = vpop.f32.mrf.mxu0
    %v816 = vadd.f32 %v643, %v815
    %817 = vdwg.mxu0
    %818 = vmatpush.bf16.msra.mxu0 %v756
    %819 = vmatpush.bf16.msra.mxu0 %v755
    %820 = vmatpush.bf16.msra.mxu0 %v754
    %821 = vmatpush.bf16.msra.mxu0 %v753
    %822 = vmatpush.bf16.msra.mxu0 %v752
    %823 = vmatpush.bf16.msra.mxu0 %v751
    %824 = vmatpush.bf16.msra.mxu0 %v750
    %825 = vmatpush.bf16.msra.mxu0 %v749
    %826 = vmatmul.bf16.gmra.mxu0 %v575
    %v827 = vpop.f32.mrf.mxu0
    %v828 = vadd.f32 %v799, %v827
    %v829 = vpop.f32.mrf.mxu0
    %v830 = vadd.f32 %v801, %v829
    %831 = vmatmul.bf16.gmra.mxu0 %v576
    %v832 = vpop.f32.mrf.mxu0
    %v833 = vadd.f32 %v804, %v832
    %v834 = vpop.f32.mrf.mxu0
    %v835 = vadd.f32 %v806, %v834
    %836 = vmatmul.bf16.gmra.mxu0 %v577
    %v837 = vpop.f32.mrf.mxu0
    %v838 = vadd.f32 %v809, %v837
    %v839 = vpop.f32.mrf.mxu0
    %v840 = vadd.f32 %v811, %v839
    %841 = vmatmul.bf16.gmra.mxu0 %v578
    %v842 = vpop.f32.mrf.mxu0
    %v843 = vadd.f32 %v814, %v842
    %v844 = vpop.f32.mrf.mxu0
    %v845 = vadd.f32 %v816, %v844
    %846 = vdwg.mxu0
    %847 = vmatpush.bf16.msra.mxu0 %v764
    %848 = vmatpush.bf16.msra.mxu0 %v763
    %849 = vmatpush.bf16.msra.mxu0 %v762
    %850 = vmatpush.bf16.msra.mxu0 %v761
    %851 = vmatpush.bf16.msra.mxu0 %v760
    %852 = vmatpush.bf16.msra.mxu0 %v759
    %853 = vmatpush.bf16.msra.mxu0 %v758
    %854 = vmatpush.bf16.msra.mxu0 %v757
    %855 = vmatmul.bf16.gmra.mxu0 %v585
    %v856 = vpop.f32.mrf.mxu0
    %v857 = vadd.f32 %v828, %v856
    %v858 = vpop.f32.mrf.mxu0
    %v859 = vadd.f32 %v830, %v858
    %860 = vmatmul.bf16.gmra.mxu0 %v586
    %v861 = vpop.f32.mrf.mxu0
    %v862 = vadd.f32 %v833, %v861
    %v863 = vpop.f32.mrf.mxu0
    %v864 = vadd.f32 %v835, %v863
    %865 = vmatmul.bf16.gmra.mxu0 %v587
    %v866 = vpop.f32.mrf.mxu0
    %v867 = vadd.f32 %v838, %v866
    %v868 = vpop.f32.mrf.mxu0
    %v869 = vadd.f32 %v840, %v868
    %870 = vmatmul.bf16.gmra.mxu0 %v588
    %v871 = vpop.f32.mrf.mxu0
    %v872 = vadd.f32 %v843, %v871
    %v873 = vpop.f32.mrf.mxu0
    %v874 = vadd.f32 %v845, %v873
    %875 = vdwg.mxu0
    %v876 = vxor.u32 %v857, 2147483648
    %v877 = vxor.u32 %v859, 2147483648
    %v878 = vxor.u32 %v862, 2147483648
    %v879 = vxor.u32 %v864, 2147483648
    %v880 = vxor.u32 %v867, 2147483648
    %v881 = vxor.u32 %v869, 2147483648
    %v882 = vxor.u32 %v872, 2147483648
    %v883 = vxor.u32 %v874, 2147483648
    %v884 = vmul.f32 %v876, 1.442695
    %v885 = vpow.pop %v884
    %v886 = vmul.f32 %v877, 1.442695
    %v887 = vpow.pop %v886
    %v888 = vmul.f32 %v878, 1.442695
    %v889 = vpow.pop %v888
    %v890 = vmul.f32 %v879, 1.442695
    %v891 = vpow.pop %v890
    %v892 = vmul.f32 %v880, 1.442695
    %v893 = vpow.pop %v892
    %v894 = vmul.f32 %v881, 1.442695
    %v895 = vpow.pop %v894
    %v896 = vmul.f32 %v882, 1.442695
    %v897 = vpow.pop %v896
    %v898 = vmul.f32 %v883, 1.442695
    %v899 = vpow.pop %v898
    %v900 = vadd.f32 %v885, 1.0
    %v901 = vadd.f32 %v887, 1.0
    %v902 = vadd.f32 %v889, 1.0
    %v903 = vadd.f32 %v891, 1.0
    %v904 = vadd.f32 %v893, 1.0
    %v905 = vadd.f32 %v895, 1.0
    %v906 = vadd.f32 %v897, 1.0
    %v907 = vadd.f32 %v899, 1.0
    %v908 = vrcp.pop %v900
    %v909 = vmul.f32 %v900, %v908
    %v910 = vsub.f32 1.0, %v909
    %v911 = vmul.f32 %v908, %v910
    %v912 = vadd.f32 %v908, %v911
    %vm913 = vweird.f32 %v900
    %vm914 = vweird.f32 %v908
    %vm915 = vmor %vm913, %vm914
    %v916 = vsel %vm915, %v908, %v912
    %v917 = vand.u32 2147483647, %v900
    %vm918 = vcmp.eq.f32.partialorder %v917, 8.507059e+37
    %v919 = vand.u32 %v900, 2147483648
    %v920 = vor.u32 1.1754944e-38, %v919
    %v921 = vsel %vm918, %v920, %v916
    %v922 = vmul.f32 1.0, %v921
    %v923 = vrcp.pop %v901
    %v924 = vmul.f32 %v901, %v923
    %v925 = vsub.f32 1.0, %v924
    %v926 = vmul.f32 %v923, %v925
    %v927 = vadd.f32 %v923, %v926
    %vm928 = vweird.f32 %v901
    %vm929 = vweird.f32 %v923
    %vm930 = vmor %vm928, %vm929
    %v931 = vsel %vm930, %v923, %v927
    %v932 = vand.u32 2147483647, %v901
    %vm933 = vcmp.eq.f32.partialorder %v932, 8.507059e+37
    %v934 = vand.u32 %v901, 2147483648
    %v935 = vor.u32 1.1754944e-38, %v934
    %v936 = vsel %vm933, %v935, %v931
    %v937 = vmul.f32 1.0, %v936
    %v938 = vrcp.pop %v902
    %v939 = vmul.f32 %v902, %v938
    %v940 = vsub.f32 1.0, %v939
    %v941 = vmul.f32 %v938, %v940
    %v942 = vadd.f32 %v938, %v941
    %vm943 = vweird.f32 %v902
    %vm944 = vweird.f32 %v938
    %vm945 = vmor %vm943, %vm944
    %v946 = vsel %vm945, %v938, %v942
    %v947 = vand.u32 2147483647, %v902
    %vm948 = vcmp.eq.f32.partialorder %v947, 8.507059e+37
    %v949 = vand.u32 %v902, 2147483648
    %v950 = vor.u32 1.1754944e-38, %v949
    %v951 = vsel %vm948, %v950, %v946
    %v952 = vmul.f32 1.0, %v951
    %v953 = vrcp.pop %v903
    %v954 = vmul.f32 %v903, %v953
    %v955 = vsub.f32 1.0, %v954
    %v956 = vmul.f32 %v953, %v955
    %v957 = vadd.f32 %v953, %v956
    %vm958 = vweird.f32 %v903
    %vm959 = vweird.f32 %v953
    %vm960 = vmor %vm958, %vm959
    %v961 = vsel %vm960, %v953, %v957
    %v962 = vand.u32 2147483647, %v903
    %vm963 = vcmp.eq.f32.partialorder %v962, 8.507059e+37
    %v964 = vand.u32 %v903, 2147483648
    %v965 = vor.u32 1.1754944e-38, %v964
    %v966 = vsel %vm963, %v965, %v961
    %v967 = vmul.f32 1.0, %v966
    %v968 = vrcp.pop %v904
    %v969 = vmul.f32 %v904, %v968
    %v970 = vsub.f32 1.0, %v969
    %v971 = vmul.f32 %v968, %v970
    %v972 = vadd.f32 %v968, %v971
    %vm973 = vweird.f32 %v904
    %vm974 = vweird.f32 %v968
    %vm975 = vmor %vm973, %vm974
    %v976 = vsel %vm975, %v968, %v972
    %v977 = vand.u32 2147483647, %v904
    %vm978 = vcmp.eq.f32.partialorder %v977, 8.507059e+37
    %v979 = vand.u32 %v904, 2147483648
    %v980 = vor.u32 1.1754944e-38, %v979
    %v981 = vsel %vm978, %v980, %v976
    %v982 = vmul.f32 1.0, %v981
    %v983 = vrcp.pop %v905
    %v984 = vmul.f32 %v905, %v983
    %v985 = vsub.f32 1.0, %v984
    %v986 = vmul.f32 %v983, %v985
    %v987 = vadd.f32 %v983, %v986
    %vm988 = vweird.f32 %v905
    %vm989 = vweird.f32 %v983
    %vm990 = vmor %vm988, %vm989
    %v991 = vsel %vm990, %v983, %v987
    %v992 = vand.u32 2147483647, %v905
    %vm993 = vcmp.eq.f32.partialorder %v992, 8.507059e+37
    %v994 = vand.u32 %v905, 2147483648
    %v995 = vor.u32 1.1754944e-38, %v994
    %v996 = vsel %vm993, %v995, %v991
    %v997 = vmul.f32 1.0, %v996
    %v998 = vrcp.pop %v906
    %v999 = vmul.f32 %v906, %v998
    %v1000 = vsub.f32 1.0, %v999
    %v1001 = vmul.f32 %v998, %v1000
    %v1002 = vadd.f32 %v998, %v1001
    %vm1003 = vweird.f32 %v906
    %vm1004 = vweird.f32 %v998
    %vm1005 = vmor %vm1003, %vm1004
    %v1006 = vsel %vm1005, %v998, %v1002
    %v1007 = vand.u32 2147483647, %v906
    %vm1008 = vcmp.eq.f32.partialorder %v1007, 8.507059e+37
    %v1009 = vand.u32 %v906, 2147483648
    %v1010 = vor.u32 1.1754944e-38, %v1009
    %v1011 = vsel %vm1008, %v1010, %v1006
    %v1012 = vmul.f32 1.0, %v1011
    %v1013 = vrcp.pop %v907
    %v1014 = vmul.f32 %v907, %v1013
    %v1015 = vsub.f32 1.0, %v1014
    %v1016 = vmul.f32 %v1013, %v1015
    %v1017 = vadd.f32 %v1013, %v1016
    %vm1018 = vweird.f32 %v907
    %vm1019 = vweird.f32 %v1013
    %vm1020 = vmor %vm1018, %vm1019
    %v1021 = vsel %vm1020, %v1013, %v1017
    %v1022 = vand.u32 2147483647, %v907
    %vm1023 = vcmp.eq.f32.partialorder %v1022, 8.507059e+37
    %v1024 = vand.u32 %v907, 2147483648
    %v1025 = vor.u32 1.1754944e-38, %v1024
    %v1026 = vsel %vm1023, %v1025, %v1021
    %v1027 = vmul.f32 1.0, %v1026
    %1028 = vst [vmem:[%s9] sm:$0xff] %v922
    %1029 = vst [vmem:[%s9 + $0x8] sm:$0xff] %v937
    %1030 = vst [vmem:[%s9 + $0x10] sm:$0xff] %v952
    %1031 = vst [vmem:[%s9 + $0x18] sm:$0xff] %v967
    %1032 = vst [vmem:[%s9 + $0x20] sm:$0xff] %v982
    %1033 = vst [vmem:[%s9 + $0x28] sm:$0xff] %v997
    %1034 = vst [vmem:[%s9 + $0x30] sm:$0xff] %v1012
    %1035 = vst [vmem:[%s9 + $0x38] sm:$0xff] %v1027
    // Predicated region
    $region54: #{decode_from_num.1} parent=1 // pred_check
      _
    $region55: #{decode_from_num.1} parent=1 // pred_check_branch
      %1037 = sbr.rel (0) target = $region57
    $region56: #{decode_from_num.1} parent=1 // pred_region
      _
    $region57: #{decode_from_num.1} parent=1 // pred_fallthru
      _
    // Predicated region
    $region58: #{decode_from_num.1} parent=1 // pred_check
      _
    $region59: #{decode_from_num.1} parent=1 // pred_check_branch
      %1039 = sbr.rel (0) target = $region61
    $region60: #{decode_from_num.1} parent=1 // pred_region
      _
    $region61: #{decode_from_num.1} parent=1 // pred_fallthru
      _
    %1040 = vsyncpa [#allocation3], 1
    %1041 = vsyncpa [#allocation5], 1
    %1042 = vsyncpa [#allocation8], 1

</llo_original>
